<compile_context>
chip_gen: v7x
topology: tpu7x:2x2x1
jax: 0.10.0
libtpu: 0.0.40
codegen_flags: <defaults>
</compile_context>

<pallas_src>
import functools
import numpy as np
import jax
import jax.numpy as jnp
from jax.experimental import pallas as pl
from jax.experimental.pallas import tpu as pltpu

NEG_SLOPE = 0.01   # nn.LeakyReLU default
LN_EPS = 1e-5      # nn.LayerNorm default


def _round_up(v, m):
    return (v + m - 1) // m * m


def _cdiv(a, b):
    return (a + b - 1) // b


def _vmem_capacity_bytes():
    try:
        return int(pltpu.get_tpu_info().vmem_capacity_bytes)
    except Exception:
        return 64 << 20            # conservative (v7x-sized) default


def _lane_granularity():
    # v6e / v7x MXUs are 256 wide per pass; v5e and older are 128.
    try:
        kind = jax.devices()[0].device_kind.lower()
    except Exception:
        return 128
    for tag in ("v2", "v3", "v4", "v5"):
        if tag in kind:
            return 128
    return 256


# --------------------------------------------------------------------------
# Fused path: all weights VMEM-resident, one grid axis over row tiles.
# --------------------------------------------------------------------------
def _mlp_fused_kernel(x_ref, w1_ref, b1_ref, g_ref, be_ref, w2_ref, b2_ref,
                      mask_ref, o_ref, *, true_hidden):
    # fc1: bf16 operands on the MXU, f32 accumulation.
    h = jnp.dot(x_ref[...].astype(jnp.bfloat16), w1_ref[...],
                preferred_element_type=jnp.float32)
    h = h + b1_ref[...]
    # LeakyReLU (f32 on the VPU).
    h = jnp.where(h >= 0, h, NEG_SLOPE * h)
    # LayerNorm, single pass.  Padded hidden lanes are exactly 0 (zero weight
    # cols + zero bias), so sums over the padded width equal sums over the true
    # width; divide by the TRUE hidden size.
    inv_h = 1.0 / true_hidden
    s = jnp.sum(h, axis=-1, keepdims=True)
    ss = jnp.sum(h * h, axis=-1, keepdims=True)
    mu = s * inv_h
    var = jnp.maximum(ss * inv_h - mu * mu, 0.0)
    hn = (h - mu) * jax.lax.rsqrt(var + LN_EPS)
    hn = hn * g_ref[...] + be_ref[...]            # pad lanes: gamma=beta=0 -> 0
    # fc2.
    y = jnp.dot(hn.astype(jnp.bfloat16), w2_ref[...],
                preferred_element_type=jnp.float32)
    y = (y + b2_ref[...]) * mask_ref[...]
    o_ref[...] = y.astype(o_ref.dtype)


# --------------------------------------------------------------------------
# Hidden-tiled fallback: grid = (row tiles, 2 * n_h hidden tiles).
#   pass 0 (k <  n_h): h_k = LeakyReLU(x @ w1[:,k] + b1[k]); stash; accumulate
#                      sum / sum-of-squares for LayerNorm.
#   k == n_h         : finalize mean / rstd, zero the fc2 accumulator.
#   pass 1 (k >= n_h): normalize stashed tile kk, acc += hn_kk @ w2[kk].
#   last k           : add b2, apply mask, write output.
# TODO(synk): no input-dim (fc1 K) tiling; extremely large in_features could
#             still exceed VMEM for a single (Dp, th) weight block.
# --------------------------------------------------------------------------
def _mlp_tiled_kernel(x_ref, w1_ref, b1_ref, g_ref, be_ref, w2_ref, b2_ref,
                      mask_ref, o_ref, h_scr, s_scr, ss_scr, acc_scr,
                      *, true_hidden, n_h):
    k = pl.program_id(1)

    @pl.when(k == 0)
    def _():
        s_scr[...] = jnp.zeros_like(s_scr)
        ss_scr[...] = jnp.zeros_like(ss_scr)

    @pl.when(k < n_h)
    def _():
        h = jnp.dot(x_ref[...].astype(jnp.bfloat16), w1_ref[...],
                    preferred_element_type=jnp.float32)
        h = h + b1_ref[...]
        h = jnp.where(h >= 0, h, NEG_SLOPE * h)
        s_scr[...] += jnp.sum(h, axis=-1, keepdims=True)
        ss_scr[...] += jnp.sum(h * h, axis=-1, keepdims=True)
        h_scr[k] = h

    @pl.when(k == n_h)
    def _():
        inv_h = 1.0 / true_hidden
        mu = s_scr[...] * inv_h
        var = jnp.maximum(ss_scr[...] * inv_h - mu * mu, 0.0)
        s_scr[...] = mu
        ss_scr[...] = jax.lax.rsqrt(var + LN_EPS)
        acc_scr[...] = jnp.zeros_like(acc_scr)

    @pl.when(k >= n_h)
    def _():
        kk = k - n_h
        h = h_scr[kk]
        hn = (h - s_scr[...]) * ss_scr[...]
        hn = hn * g_ref[...] + be_ref[...]
        acc_scr[...] += jnp.dot(hn.astype(jnp.bfloat16), w2_ref[...],
                                preferred_element_type=jnp.float32)

    @pl.when(k == 2 * n_h - 1)
    def _():
        y = (acc_scr[...] + b2_ref[...]) * mask_ref[...]
        o_ref[...] = y.astype(o_ref.dtype)


# --------------------------------------------------------------------------
# Sizing helpers
# --------------------------------------------------------------------------
def _fused_tile_bytes(t, Dp, Hp, Op, xbytes, obytes):
    io = 2 * (t * Dp * xbytes + t * 4 + t * Op * obytes)   # double-buffered x, mask, out
    inter = t * Hp * 4 + t * Hp * 2 + t * Op * 4           # f32 h, bf16 hn, f32 y
    return io + inter


def _choose_tm(M, budget, tile_bytes_fn, min_steps_target=4):
    m8 = _round_up(max(M, 8), 8)
    cands = sorted({c for c in (1024, 768, 512, 384, 256, 128, 64, 32, 16, 8, m8)
                    if 8 <= c <= m8}, reverse=True)
    cands = [c for c in cands if tile_bytes_fn(c) <= budget] or [8]
    min_steps = min(min_steps_target, _cdiv(M, 8))
    best, best_cost = None, None
    for t in cands:
        steps = _cdiv(M, t)
        if steps < min_steps:
            continue
        cost = steps * t + 64 * steps          # padded rows + per-step overhead
        if best is None or cost < best_cost:
            best, best_cost = t, cost
    return best if best is not None else min(cands)


# --------------------------------------------------------------------------
# Wrapper
# --------------------------------------------------------------------------
def mlp_forward(x, mask, params, *, out_dtype=None, tm=None,
                force_tiled=False, tile_h=None, lane_gran=None):
    """x: (..., in_features); mask: (..., 1) broadcastable or None."""
    *lead, F = x.shape
    H = params["w1"].shape[1]
    O = params["w2"].shape[1]
    M = int(np.prod(lead)) if lead else 1

    gran = int(lane_gran) if lane_gran else _lane_granularity()
    Dp = _round_up(F, gran)
    Hp = _round_up(H, gran)
    Op = _round_up(O, gran)

    out_dtype = jnp.dtype(out_dtype) if out_dtype is not None else x.dtype
    obytes = jnp.dtype(out_dtype).itemsize
    xbytes = 2 if F != Dp else jnp.dtype(x.dtype).itemsize

    phys = _vmem_capacity_bytes()
    usable = max(min(phys - (16 << 20), 100 << 20), 24 << 20)

    # Single-buffered resident weights/biases for the fused path.
    resident = Dp * Hp * 2 + Hp * Op * 2 + (3 * Hp + Op) * 4
    fused_tile = functools.partial(_fused_tile_bytes, Dp=Dp, Hp=Hp, Op=Op,
                                   xbytes=xbytes, obytes=obytes)
    fused_budget = usable - resident - (6 << 20)
    use_fused = ((not force_tiled)
                 and resident <= int(0.6 * usable)
                 and fused_tile(8) <= fused_budget)

    if use_fused:
        if tm is None:
            tm = _choose_tm(M, fused_budget, fused_tile)
    else:
        # -------- hidden-tile sizing --------
        if tile_h is not None:
            th = max(gran, _round_up(int(tile_h), gran))
        else:
            th = gran
            for cand in (2048, 1024, 512, 256, 128):
                if cand % gran != 0 or cand > _round_up(H, gran):
                    continue
                wb = 2 * (Dp * cand * 2 + cand * Op * 2 + 3 * cand * 4)
                if wb <= usable // 2:
                    th = cand
                    break
        Hp = _round_up(Hp, th)
        n_h = Hp // th
        w_stream = 2 * (Dp * th * 2 + th * Op * 2 + 3 * th * 4) + Op * 4

        def tiled_tile(t):
            io = 2 * (t * Dp * xbytes + t * 4 + t * Op * obytes)
            scr = t * Hp * 4 + 2 * t * 4 + t * Op * 4       # h stash, stats, acc
            inter = t * th * 6 + t * Op * 4                  # per-tile f32 h + bf16 hn, dot out
            return io + scr + inter

        tiled_budget = usable - w_stream - (6 << 20)
        if tm is None:
            tm = _choose_tm(M, max(tiled_budget, tiled_tile(8)), tiled_tile,
                            min_steps_target=2)

    tm = int(max(8, _round_up(int(tm), 8)))
    Mp = _round_up(max(M, tm), tm)

    # -------- operand prep: pad/cast only when actually needed --------
    x_rows = x.reshape(M, F)
    if F == Dp and M == Mp:
        x_in = x_rows                                   # cast to bf16 in-kernel
    else:
        xdt = jnp.bfloat16 if F != Dp else x.dtype
        x_in = jnp.zeros((Mp, Dp), xdt).at[:M, :F].set(x_rows.astype(xdt))

    if mask is None:
        mask_rows = jnp.ones((M, 1), jnp.float32)
    else:
        mask_rows = jnp.broadcast_to(
            mask.reshape(M, -1)[:, :1].astype(jnp.float32), (M, 1))
    if M == Mp:
        mask_in = mask_rows
    else:
        mask_in = jnp.zeros((Mp, 1), jnp.float32).at[:M].set(mask_rows)

    def pad2(a, r, c):
        if a.shape == (r, c):
            return a
        return jnp.zeros((r, c), a.dtype).at[:a.shape[0], :a.shape[1]].set(a)

    w1 = pad2(params["w1"].astype(jnp.bfloat16), Dp, Hp)
    w2 = pad2(params["w2"].astype(jnp.bfloat16), Hp, Op)
    b1 = pad2(params["b1"].reshape(1, H).astype(jnp.float32), 1, Hp)
    g = pad2(params["gamma"].reshape(1, H).astype(jnp.float32), 1, Hp)
    be = pad2(params["beta"].reshape(1, H).astype(jnp.float32), 1, Hp)
    b2 = pad2(params["b2"].reshape(1, O).astype(jnp.float32), 1, Op)

    cost = pl.CostEstimate(
        flops=int(2 * Mp * (Dp * Hp + Hp * Op)),
        transcendentals=int(Mp),
        bytes_accessed=int(Mp * Dp * xbytes + Mp * 4 + Mp * Op * obytes
                           + Dp * Hp * 2 + Hp * Op * 2 + (3 * Hp + Op) * 4),
    )

    if use_fused:
        est = resident + fused_tile(tm)
        vmem_limit = int(max(16 << 20, min(est + (8 << 20), phys - (4 << 20))))
        kernel = functools.partial(_mlp_fused_kernel, true_hidden=float(H))
        row = lambda i: (i, 0)
        const = lambda i: (0, 0)
        buf1 = pl.Buffered(1)                 # constant blocks: no double-buffer
        out = pl.pallas_call(
            kernel,
            out_shape=jax.ShapeDtypeStruct((Mp, Op), out_dtype),
            grid=(Mp // tm,),
            in_specs=[
                pl.BlockSpec((tm, Dp), row),                               # x rows
                pl.BlockSpec((Dp, Hp), const, pipeline_mode=buf1),         # fc1 W
                pl.BlockSpec((1, Hp), const, pipeline_mode=buf1),          # fc1 b
                pl.BlockSpec((1, Hp), const, pipeline_mode=buf1),          # gamma
                pl.BlockSpec((1, Hp), const, pipeline_mode=buf1),          # beta
                pl.BlockSpec((Hp, Op), const, pipeline_mode=buf1),         # fc2 W
                pl.BlockSpec((1, Op), const, pipeline_mode=buf1),          # fc2 b
                pl.BlockSpec((tm, 1), row),                                # mask rows
            ],
            out_specs=pl.BlockSpec((tm, Op), row),    # lane-dense: Op % 128 == 0
            compiler_params=pltpu.CompilerParams(
                dimension_semantics=("parallel",),
                vmem_limit_bytes=vmem_limit),
            cost_estimate=cost,
        )(x_in, w1, b1, g, be, w2, b2, mask_in)
    else:
        est = w_stream + tiled_tile(tm)
        vmem_limit = int(max(16 << 20, min(est + (8 << 20), phys - (4 << 20))))
        kernel = functools.partial(_mlp_tiled_kernel,
                                   true_hidden=float(H), n_h=n_h)
        out = pl.pallas_call(
            kernel,
            out_shape=jax.ShapeDtypeStruct((Mp, Op), out_dtype),
            grid=(Mp // tm, 2 * n_h),
            in_specs=[
                pl.BlockSpec((tm, Dp), lambda i, k: (i, 0)),
                pl.BlockSpec((Dp, th), lambda i, k: (0, jnp.minimum(k, n_h - 1))),
                pl.BlockSpec((1, th), lambda i, k: (0, jnp.minimum(k, n_h - 1))),
                pl.BlockSpec((1, th), lambda i, k: (0, jnp.maximum(k - n_h, 0))),
                pl.BlockSpec((1, th), lambda i, k: (0, jnp.maximum(k - n_h, 0))),
                pl.BlockSpec((th, Op), lambda i, k: (jnp.maximum(k - n_h, 0), 0)),
                pl.BlockSpec((1, Op), lambda i, k: (0, 0),
                             pipeline_mode=pl.Buffered(1)),
                pl.BlockSpec((tm, 1), lambda i, k: (i, 0)),
            ],
            out_specs=pl.BlockSpec((tm, Op), lambda i, k: (i, 0)),
            scratch_shapes=[
                pltpu.VMEM((n_h, tm, th), jnp.float32),   # stashed LeakyReLU(fc1)
                pltpu.VMEM((tm, 1), jnp.float32),         # sum  -> mean
                pltpu.VMEM((tm, 1), jnp.float32),         # ssq  -> rstd
                pltpu.VMEM((tm, Op), jnp.float32),        # fc2 accumulator
            ],
            compiler_params=pltpu.CompilerParams(
                dimension_semantics=("parallel", "arbitrary"),
                vmem_limit_bytes=vmem_limit),
            cost_estimate=cost,
        )(x_in, w1, b1, g, be, w2, b2, mask_in)

    if M != Mp or O != Op:
        out = out[:M, :O]
    return out.reshape(*lead, O)


# --------------------------------------------------------------------------
# Pure-JAX reference (mirrors MLP.forward; same bf16 MXU-operand rounding as
# the kernel so the check is tight).
# --------------------------------------------------------------------------
def reference_forward(x, mask, params):
    w1 = params["w1"].astype(jnp.bfloat16)
    w2 = params["w2"].astype(jnp.bfloat16)
    h = jnp.dot(x.astype(jnp.bfloat16), w1, preferred_element_type=jnp.float32)
    h = h + params["b1"]
    h = jnp.where(h >= 0, h, NEG_SLOPE * h)
    mu = jnp.mean(h, axis=-1, keepdims=True)
    var = jnp.mean((h - mu) ** 2, axis=-1, keepdims=True)
    hn = (h - mu) * jax.lax.rsqrt(var + LN_EPS) * params["gamma"] + params["beta"]
    y = jnp.dot(hn.astype(jnp.bfloat16), w2, preferred_element_type=jnp.float32)
    y = y + params["b2"]
    if mask is not None:
        y = y * mask
    return y


def init_params(key, in_features, hidden_features, out_features):
    ks = jax.random.split(key, 6)
    return {
        # fc1: Linear(in, hidden), stored pre-transposed as (in, hidden)
        "w1": jax.random.normal(ks[0], (in_features, hidden_features), jnp.float32)
              * (1.0 / np.sqrt(in_features)),
        "b1": jax.random.normal(ks[1], (hidden_features,), jnp.float32) * 0.1,
        "gamma": jax.random.normal(ks[2], (hidden_features,), jnp.float32) * 0.1 + 1.0,
        "beta": jax.random.normal(ks[3], (hidden_features,), jnp.float32) * 0.1,
        # fc2: Linear(hidden, out), stored as (hidden, out)
        "w2": jax.random.normal(ks[4], (hidden_features, out_features), jnp.float32)
              * (1.0 / np.sqrt(hidden_features)),
        "b2": jax.random.normal(ks[5], (out_features,), jnp.float32) * 0.1,
    }


if __name__ == "__main__":
    key = jax.random.PRNGKey(0)
    k_x, k_m, k_p, k_x2, k_m2, k_p2 = jax.random.split(key, 6)

    # ---- test 1: fused path, module-default small shapes ----
    B, N = 2, 8
    in_f, hid_f, out_f = 16, 32, 16          # out_features defaults to in_features
    x = jax.random.normal(k_x, (B, N, in_f), jnp.float32)
    mask = (jax.random.uniform(k_m, (B, N, 1)) > 0.2).astype(jnp.float32)
    params = init_params(k_p, in_f, hid_f, out_f)

    y = mlp_forward(x, mask, params)
    jax.block_until_ready(y)
    np.testing.assert_allclose(np.asarray(y),
                               np.asarray(reference_forward(x, mask, params)),
                               rtol=5e-3, atol=5e-3)

    y_nm = mlp_forward(x, None, params)
    jax.block_until_ready(y_nm)
    np.testing.assert_allclose(np.asarray(y_nm),
                               np.asarray(reference_forward(x, None, params)),
                               rtol=5e-3, atol=5e-3)

    # ---- test 2: hidden-tiled fallback path, forced at small shapes ----
    in2, hid2, out2 = 64, 256, 64
    x2 = jax.random.normal(k_x2, (B, N, in2), jnp.float32)
    mask2 = (jax.random.uniform(k_m2, (B, N, 1)) > 0.2).astype(jnp.float32)
    params2 = init_params(k_p2, in2, hid2, out2)

    y2 = mlp_forward(x2, mask2, params2,
                     force_tiled=True, tile_h=128, lane_gran=128)
    jax.block_until_ready(y2)
    np.testing.assert_allclose(np.asarray(y2),
                               np.asarray(reference_forward(x2, mask2, params2)),
                               rtol=5e-3, atol=5e-3)

    print("KERNEL_OK")
</pallas_src>

<mosaic_0001>
module attributes {stable_mosaic.version = 11 : i64} {
  func.func @_mlp_fused_kernel(%arg0: i32, %arg1: memref<8x256xbf16, #tpu.memory_space<vmem>>, %arg2: memref<256x256xbf16, #tpu.memory_space<vmem>>, %arg3: memref<1x256xf32, #tpu.memory_space<vmem>>, %arg4: memref<1x256xf32, #tpu.memory_space<vmem>>, %arg5: memref<1x256xf32, #tpu.memory_space<vmem>>, %arg6: memref<256x256xbf16, #tpu.memory_space<vmem>>, %arg7: memref<1x256xf32, #tpu.memory_space<vmem>>, %arg8: memref<8x1xf32, #tpu.memory_space<vmem>>, %arg9: memref<8x256xf32, #tpu.memory_space<vmem>>) attributes {dimension_semantics = [#tpu.dimension_semantics<parallel>], iteration_bounds = array<i64: 2>, scalar_prefetch = 0 : i64, scratch_operands = 0 : i64, tpu.core_type = #tpu.core_type<tc>, window_params = [{transform_indices = @transform_0, window_bounds = array<i64: 8, 256>}, {pipeline_mode = #tpu.pipeline_mode<synchronous>, transform_indices = @transform_1, window_bounds = array<i64: 256, 256>}, {pipeline_mode = #tpu.pipeline_mode<synchronous>, transform_indices = @transform_2, window_bounds = array<i64: 1, 256>}, {pipeline_mode = #tpu.pipeline_mode<synchronous>, transform_indices = @transform_3, window_bounds = array<i64: 1, 256>}, {pipeline_mode = #tpu.pipeline_mode<synchronous>, transform_indices = @transform_4, window_bounds = array<i64: 1, 256>}, {pipeline_mode = #tpu.pipeline_mode<synchronous>, transform_indices = @transform_5, window_bounds = array<i64: 256, 256>}, {pipeline_mode = #tpu.pipeline_mode<synchronous>, transform_indices = @transform_6, window_bounds = array<i64: 1, 256>}, {transform_indices = @transform_7, window_bounds = array<i64: 8, 1>}, {transform_indices = @transform_8, window_bounds = array<i64: 8, 256>}]} {
    %c0 = arith.constant 0 : index
    %c0_0 = arith.constant 0 : index
    %0 = vector.load %arg1[%c0, %c0_0] : memref<8x256xbf16, #tpu.memory_space<vmem>>, vector<8x256xbf16>
    %c0_1 = arith.constant 0 : index
    %c0_2 = arith.constant 0 : index
    %1 = vector.load %arg2[%c0_1, %c0_2] : memref<256x256xbf16, #tpu.memory_space<vmem>>, vector<256x256xbf16>
    %cst = arith.constant dense<0.000000e+00> : vector<8x256xf32>
    %2 = tpu.matmul %0, %1, %cst {dimension_numbers = #tpu.dot_dimension_numbers<[1], [0], [0], [1], [0, 0, 1, 1], [], []>} : vector<8x256xbf16>, vector<256x256xbf16>, vector<8x256xf32> -> vector<8x256xf32>
    %c0_3 = arith.constant 0 : index
    %c0_4 = arith.constant 0 : index
    %3 = vector.load %arg3[%c0_3, %c0_4] : memref<1x256xf32, #tpu.memory_space<vmem>>, vector<1x256xf32>
    %4 = vector.broadcast %3 : vector<1x256xf32> to vector<8x256xf32>
    %5 = arith.addf %2, %4 : vector<8x256xf32>
    %cst_5 = arith.constant 0.000000e+00 : f32
    %6 = vector.broadcast %cst_5 : f32 to vector<8x256xf32>
    %7 = arith.cmpf oge, %5, %6 : vector<8x256xf32>
    %cst_6 = arith.constant 0.00999999977 : f32
    %8 = vector.broadcast %cst_6 : f32 to vector<8x256xf32>
    %9 = arith.mulf %8, %5 : vector<8x256xf32>
    %10 = arith.select %7, %5, %9 : vector<8x256xi1>, vector<8x256xf32>
    %cst_7 = arith.constant dense<0.000000e+00> : vector<8xf32>
    %11 = vector.multi_reduction <add>, %10, %cst_7 [1] : vector<8x256xf32> to vector<8xf32>
    %12 = vector.shape_cast %11 : vector<8xf32> to vector<8x1xf32>
    %13 = arith.mulf %10, %10 : vector<8x256xf32>
    %cst_8 = arith.constant dense<0.000000e+00> : vector<8xf32>
    %14 = vector.multi_reduction <add>, %13, %cst_8 [1] : vector<8x256xf32> to vector<8xf32>
    %15 = vector.shape_cast %14 : vector<8xf32> to vector<8x1xf32>
    %cst_9 = arith.constant 3.125000e-02 : f32
    %16 = vector.broadcast %cst_9 : f32 to vector<8x1xf32>
    %17 = arith.mulf %12, %16 : vector<8x1xf32>
    %cst_10 = arith.constant 3.125000e-02 : f32
    %18 = vector.broadcast %cst_10 : f32 to vector<8x1xf32>
    %19 = arith.mulf %15, %18 : vector<8x1xf32>
    %20 = arith.mulf %17, %17 : vector<8x1xf32>
    %21 = arith.subf %19, %20 : vector<8x1xf32>
    %cst_11 = arith.constant 0.000000e+00 : f32
    %22 = vector.broadcast %cst_11 : f32 to vector<8x1xf32>
    %23 = arith.maximumf %21, %22 : vector<8x1xf32>
    %24 = vector.broadcast %17 : vector<8x1xf32> to vector<8x256xf32>
    %25 = arith.subf %10, %24 : vector<8x256xf32>
    %cst_12 = arith.constant 9.99999974E-6 : f32
    %26 = vector.broadcast %cst_12 : f32 to vector<8x1xf32>
    %27 = arith.addf %23, %26 : vector<8x1xf32>
    %28 = math.rsqrt %27 : vector<8x1xf32>
    %29 = vector.broadcast %28 : vector<8x1xf32> to vector<8x256xf32>
    %30 = arith.mulf %25, %29 : vector<8x256xf32>
    %c0_13 = arith.constant 0 : index
    %c0_14 = arith.constant 0 : index
    %31 = vector.load %arg4[%c0_13, %c0_14] : memref<1x256xf32, #tpu.memory_space<vmem>>, vector<1x256xf32>
    %32 = vector.broadcast %31 : vector<1x256xf32> to vector<8x256xf32>
    %33 = arith.mulf %30, %32 : vector<8x256xf32>
    %c0_15 = arith.constant 0 : index
    %c0_16 = arith.constant 0 : index
    %34 = vector.load %arg5[%c0_15, %c0_16] : memref<1x256xf32, #tpu.memory_space<vmem>>, vector<1x256xf32>
    %35 = vector.broadcast %34 : vector<1x256xf32> to vector<8x256xf32>
    %36 = arith.addf %33, %35 : vector<8x256xf32>
    %37 = arith.truncf %36 : vector<8x256xf32> to vector<8x256xbf16>
    %c0_17 = arith.constant 0 : index
    %c0_18 = arith.constant 0 : index
    %38 = vector.load %arg6[%c0_17, %c0_18] : memref<256x256xbf16, #tpu.memory_space<vmem>>, vector<256x256xbf16>
    %cst_19 = arith.constant dense<0.000000e+00> : vector<8x256xf32>
    %39 = tpu.matmul %37, %38, %cst_19 {dimension_numbers = #tpu.dot_dimension_numbers<[1], [0], [0], [1], [0, 0, 1, 1], [], []>} : vector<8x256xbf16>, vector<256x256xbf16>, vector<8x256xf32> -> vector<8x256xf32>
    %c0_20 = arith.constant 0 : index
    %c0_21 = arith.constant 0 : index
    %40 = vector.load %arg7[%c0_20, %c0_21] : memref<1x256xf32, #tpu.memory_space<vmem>>, vector<1x256xf32>
    %41 = vector.broadcast %40 : vector<1x256xf32> to vector<8x256xf32>
    %42 = arith.addf %39, %41 : vector<8x256xf32>
    %c0_22 = arith.constant 0 : index
    %c0_23 = arith.constant 0 : index
    %43 = vector.load %arg8[%c0_22, %c0_23] : memref<8x1xf32, #tpu.memory_space<vmem>>, vector<8x1xf32>
    %44 = vector.broadcast %43 : vector<8x1xf32> to vector<8x256xf32>
    %45 = arith.mulf %42, %44 : vector<8x256xf32>
    %c0_24 = arith.constant 0 : index
    %c0_25 = arith.constant 0 : index
    %46 = vector.load %arg9[%c0_24, %c0_25] : memref<8x256xf32, #tpu.memory_space<vmem>>, vector<8x256xf32>
    tpu.vector_store %arg9[%c0_24, %c0_25], %45 {strides = array<i32>} : memref<8x256xf32, #tpu.memory_space<vmem>>, vector<8x256xf32>,
    return
  }
  func.func @transform_0(%arg0: i32) -> (i32, i32) {
    %c0_i32 = arith.constant 0 : i32
    %c0_i32_0 = arith.constant 0 : i32
    return %arg0, %c0_i32 : i32, i32
  }
  func.func @transform_1(%arg0: i32) -> (i32, i32) {
    %c0_i32 = arith.constant 0 : i32
    %c0_i32_0 = arith.constant 0 : i32
    %c0_i32_1 = arith.constant 0 : i32
    return %c0_i32, %c0_i32_0 : i32, i32
  }
  func.func @transform_2(%arg0: i32) -> (i32, i32) {
    %c0_i32 = arith.constant 0 : i32
    %c0_i32_0 = arith.constant 0 : i32
    %c0_i32_1 = arith.constant 0 : i32
    return %c0_i32, %c0_i32_0 : i32, i32
  }
  func.func @transform_3(%arg0: i32) -> (i32, i32) {
    %c0_i32 = arith.constant 0 : i32
    %c0_i32_0 = arith.constant 0 : i32
    %c0_i32_1 = arith.constant 0 : i32
    return %c0_i32, %c0_i32_0 : i32, i32
  }
  func.func @transform_4(%arg0: i32) -> (i32, i32) {
    %c0_i32 = arith.constant 0 : i32
    %c0_i32_0 = arith.constant 0 : i32
    %c0_i32_1 = arith.constant 0 : i32
    return %c0_i32, %c0_i32_0 : i32, i32
  }
  func.func @transform_5(%arg0: i32) -> (i32, i32) {
    %c0_i32 = arith.constant 0 : i32
    %c0_i32_0 = arith.constant 0 : i32
    %c0_i32_1 = arith.constant 0 : i32
    return %c0_i32, %c0_i32_0 : i32, i32
  }
  func.func @transform_6(%arg0: i32) -> (i32, i32) {
    %c0_i32 = arith.constant 0 : i32
    %c0_i32_0 = arith.constant 0 : i32
    %c0_i32_1 = arith.constant 0 : i32
    return %c0_i32, %c0_i32_0 : i32, i32
  }
  func.func @transform_7(%arg0: i32) -> (i32, i32) {
    %c0_i32 = arith.constant 0 : i32
    %c0_i32_0 = arith.constant 0 : i32
    return %arg0, %c0_i32 : i32, i32
  }
  func.func @transform_8(%arg0: i32) -> (i32, i32) {
    %c0_i32 = arith.constant 0 : i32
    %c0_i32_0 = arith.constant 0 : i32
    return %arg0, %c0_i32 : i32, i32
  }
}

</mosaic_0001>

<llo_original>
// kernel: tpu_custom_call.1
$region0: #{tpu_custom_call.1}
  #allocation0 [shape = 'u32[]', space=smem, size = 0x4, offset = 0x4, fixed_abs, tag = 'smem constant byte address 0x4 - core index']
  #allocation1 [shape = 'u32[144,128]{1,0:T(1,128)}', space=vmem, size = 0x12000, scoped, tag = 'internal scratch']
  %s0 = inlined_call_operand.vmem [shape: bf16[16,256], index: 0, kind: input, shape index: {}]
  %s1 = inlined_call_operand.hbm [shape: bf16[256,256], index: 1, kind: input, shape index: {}]
  %s2 = inlined_call_operand.vmem [shape: f32[1,256], index: 2, kind: input, shape index: {}]
  %s3 = inlined_call_operand.vmem [shape: f32[1,256], index: 3, kind: input, shape index: {}]
  %s4 = inlined_call_operand.vmem [shape: f32[1,256], index: 4, kind: input, shape index: {}]
  %s5 = inlined_call_operand.hbm [shape: bf16[256,256], index: 5, kind: input, shape index: {}]
  %s6 = inlined_call_operand.vmem [shape: f32[1,256], index: 6, kind: input, shape index: {}]
  %s7 = inlined_call_operand.vmem [shape: f32[16,1], index: 7, kind: input, shape index: {}]
  %s8 = inlined_call_operand.hbm [shape: f32[16,256], index: 8, kind: output, shape index: {}]
  %s9 = sld [smem:[#allocation0]]
  $region73: #{tpu_custom_call.1} parent=0
    _
  %s11 = ssub.s32 1, %s9
  %s12 = scalar_select 0, %s11, %s9
  $region1: #{tpu_custom_call.1} parent=0
    #allocation2 [shape = 'u8[131072]{0}', space=vmem, size = 0x20000, scoped, tag = 'input window, operand 1, single buffered']
    #allocation3 [shape = 's32[2]{0}', space=sflag, size = 0x8, scoped, tag = 'scoped memory for tpu_custom_call.1']
    #allocation4 [shape = 's32[2]{0}', space=sflag, size = 0x8, scoped, tag = 'scoped memory for tpu_custom_call.1']
    #allocation5 [shape = 'u8[131072]{0}', space=vmem, size = 0x20000, scoped, tag = 'input window, operand 5, single buffered']
    #allocation6 [shape = 's32[1]{0}', space=sflag, size = 0x4, scoped, tag = 'scoped memory for tpu_custom_call.1']
    #allocation7 [shape = 'u8[16384]{0}', space=vmem, size = 0x4000, scoped, tag = 'output window, operand 0']
    %13 = vsyncpa [#allocation3], 0
    %14 = vsyncpa [#allocation6], 0
    %15 = vsyncpa [#allocation4], 0
    %s16 = scalar_lea.sflag [#allocation4], 1
    %17 = vsyncpa %s16, 0
    loop: start=0, step=1, limit=4
    $region2: #{tpu_custom_call.1} parent=1 // loop_pre_header
      _
    $region3: #{tpu_custom_call.1} parent=1 // loop_header
      %s19 = sphi 0, %s23
      %p20 = scmp.ge.s32.totalorder %s19, 4
      %s29 = sphi 0, %s31
      %s32 = sphi 0, %s29
      %s33 = sphi 0, %s32
      %s49 = sphi 0, %s33
      %s53 = sphi 0, %s53
      %s55 = sphi 0, %s53
      %s56 = sphi 0, %s55
      %s70 = sphi 0, %s56
      %s74 = sphi 0, %s74
      %s76 = sphi 0, %s74
      %s77 = sphi 0, %s76
      %s91 = sphi 0, %s77
      %s95 = sphi 0, %s95
      %s97 = sphi 0, %s95
      %s98 = sphi 0, %s97
      %s112 = sphi 0, %s98
      %s116 = sphi 0, %s116
      %s118 = sphi 0, %s116
      %s119 = sphi 0, %s118
      %s133 = sphi 0, %s119
      %s137 = sphi 0, %s137
      %s139 = sphi 0, %s137
      %s140 = sphi 0, %s139
      %s154 = sphi 0, %s140
      %s158 = sphi 0, %s158
      %s160 = sphi 0, %s158
      %s161 = sphi 0, %s160
      %s175 = sphi 0, %s161
      %s181 = sphi 0, %s183
      %s184 = sphi 0, %s181
      %s185 = sphi 0, %s184
      %s201 = sphi 0, %s185
      %s207 = sphi 0, %s209
      %s210 = sphi 0, %s207
      %s211 = sphi 0, %s210
      %s227 = sphi 0, %s211
    $region4: #{tpu_custom_call.1} parent=1 // loop_header_branch
      %22 = sbr.rel (%p20) target = $region8
    $region5: #{tpu_custom_call.1} parent=1 // loop_body
      %s24 = ssub.s32 %s19, 1
      %s25 = ssub.s32 %s19, 2
      %s26 = sadd.s32 %s19, 1
      %s27 = ssub.s32 %s19, %s26
      %p28 = scmp.eq.s32.totalorder %s27, 0
      %s30 = sadd.s32 %s29, 1
      %s31 = scalar_select %p28, %s29, %s30
      %p34 = pneg %p28
      %p35 = scmp.eq.s32.totalorder %s19, 1
      %p36 = por %p34, %p35
      %p37 = scmp.ne.s32.totalorder %s29, %s32
      %p38 = scmp.eq.s32.totalorder %s19, 0
      %p39 = por %p37, %p38
      %p40 = scmp.ne.s32.totalorder %s29, %s32
      %p41 = scmp.eq.s32.totalorder %s24, 1
      %p42 = por %p40, %p41
      %p43 = scmp.ne.s32.totalorder %s32, %s33
      %p44 = scmp.eq.s32.totalorder %s24, 0
      %p45 = por %p43, %p44
      %p46 = scmp.ne.s32.totalorder %s32, %s33
      %p47 = scmp.eq.s32.totalorder %s25, 1
      %p48 = por %p46, %p47
      %p50 = scmp.ne.s32.totalorder %s33, %s49
      %p51 = scmp.eq.s32.totalorder %s25, 0
      %p52 = por %p50, %p51
      %s54 = sadd.s32 %s53, 1
      %p57 = scmp.eq.s32.totalorder %s19, 1
      %p58 = scmp.ne.s32.totalorder %s53, %s55
      %p59 = scmp.eq.s32.totalorder %s19, 0
      %p60 = por %p58, %p59
      %p61 = scmp.ne.s32.totalorder %s53, %s55
      %p62 = scmp.eq.s32.totalorder %s24, 1
      %p63 = por %p61, %p62
      %p64 = scmp.ne.s32.totalorder %s55, %s56
      %p65 = scmp.eq.s32.totalorder %s24, 0
      %p66 = por %p64, %p65
      %p67 = scmp.ne.s32.totalorder %s55, %s56
      %p68 = scmp.eq.s32.totalorder %s25, 1
      %p69 = por %p67, %p68
      %p71 = scmp.ne.s32.totalorder %s56, %s70
      %p72 = scmp.eq.s32.totalorder %s25, 0
      %p73 = por %p71, %p72
      %s75 = sadd.s32 %s74, 1
      %p78 = scmp.eq.s32.totalorder %s19, 1
      %p79 = scmp.ne.s32.totalorder %s74, %s76
      %p80 = scmp.eq.s32.totalorder %s19, 0
      %p81 = por %p79, %p80
      %p82 = scmp.ne.s32.totalorder %s74, %s76
      %p83 = scmp.eq.s32.totalorder %s24, 1
      %p84 = por %p82, %p83
      %p85 = scmp.ne.s32.totalorder %s76, %s77
      %p86 = scmp.eq.s32.totalorder %s24, 0
      %p87 = por %p85, %p86
      %p88 = scmp.ne.s32.totalorder %s76, %s77
      %p89 = scmp.eq.s32.totalorder %s25, 1
      %p90 = por %p88, %p89
      %p92 = scmp.ne.s32.totalorder %s77, %s91
      %p93 = scmp.eq.s32.totalorder %s25, 0
      %p94 = por %p92, %p93
      %s96 = sadd.s32 %s95, 1
      %p99 = scmp.eq.s32.totalorder %s19, 1
      %p100 = scmp.ne.s32.totalorder %s95, %s97
      %p101 = scmp.eq.s32.totalorder %s19, 0
      %p102 = por %p100, %p101
      %p103 = scmp.ne.s32.totalorder %s95, %s97
      %p104 = scmp.eq.s32.totalorder %s24, 1
      %p105 = por %p103, %p104
      %p106 = scmp.ne.s32.totalorder %s97, %s98
      %p107 = scmp.eq.s32.totalorder %s24, 0
      %p108 = por %p106, %p107
      %p109 = scmp.ne.s32.totalorder %s97, %s98
      %p110 = scmp.eq.s32.totalorder %s25, 1
      %p111 = por %p109, %p110
      %p113 = scmp.ne.s32.totalorder %s98, %s112
      %p114 = scmp.eq.s32.totalorder %s25, 0
      %p115 = por %p113, %p114
      %s117 = sadd.s32 %s116, 1
      %p120 = scmp.eq.s32.totalorder %s19, 1
      %p121 = scmp.ne.s32.totalorder %s116, %s118
      %p122 = scmp.eq.s32.totalorder %s19, 0
      %p123 = por %p121, %p122
      %p124 = scmp.ne.s32.totalorder %s116, %s118
      %p125 = scmp.eq.s32.totalorder %s24, 1
      %p126 = por %p124, %p125
      %p127 = scmp.ne.s32.totalorder %s118, %s119
      %p128 = scmp.eq.s32.totalorder %s24, 0
      %p129 = por %p127, %p128
      %p130 = scmp.ne.s32.totalorder %s118, %s119
      %p131 = scmp.eq.s32.totalorder %s25, 1
      %p132 = por %p130, %p131
      %p134 = scmp.ne.s32.totalorder %s119, %s133
      %p135 = scmp.eq.s32.totalorder %s25, 0
      %p136 = por %p134, %p135
      %s138 = sadd.s32 %s137, 1
      %p141 = scmp.eq.s32.totalorder %s19, 1
      %p142 = scmp.ne.s32.totalorder %s137, %s139
      %p143 = scmp.eq.s32.totalorder %s19, 0
      %p144 = por %p142, %p143
      %p145 = scmp.ne.s32.totalorder %s137, %s139
      %p146 = scmp.eq.s32.totalorder %s24, 1
      %p147 = por %p145, %p146
      %p148 = scmp.ne.s32.totalorder %s139, %s140
      %p149 = scmp.eq.s32.totalorder %s24, 0
      %p150 = por %p148, %p149
      %p151 = scmp.ne.s32.totalorder %s139, %s140
      %p152 = scmp.eq.s32.totalorder %s25, 1
      %p153 = por %p151, %p152
      %p155 = scmp.ne.s32.totalorder %s140, %s154
      %p156 = scmp.eq.s32.totalorder %s25, 0
      %p157 = por %p155, %p156
      %s159 = sadd.s32 %s158, 1
      %p162 = scmp.eq.s32.totalorder %s19, 1
      %p163 = scmp.ne.s32.totalorder %s158, %s160
      %p164 = scmp.eq.s32.totalorder %s19, 0
      %p165 = por %p163, %p164
      %p166 = scmp.ne.s32.totalorder %s158, %s160
      %p167 = scmp.eq.s32.totalorder %s24, 1
      %p168 = por %p166, %p167
      %p169 = scmp.ne.s32.totalorder %s160, %s161
      %p170 = scmp.eq.s32.totalorder %s24, 0
      %p171 = por %p169, %p170
      %p172 = scmp.ne.s32.totalorder %s160, %s161
      %p173 = scmp.eq.s32.totalorder %s25, 1
      %p174 = por %p172, %p173
      %p176 = scmp.ne.s32.totalorder %s161, %s175
      %p177 = scmp.eq.s32.totalorder %s25, 0
      %p178 = por %p176, %p177
      %s179 = ssub.s32 %s19, %s26
      %p180 = scmp.eq.s32.totalorder %s179, 0
      %s182 = sadd.s32 %s181, 1
      %s183 = scalar_select %p180, %s181, %s182
      %p186 = pneg %p180
      %p187 = scmp.eq.s32.totalorder %s19, 1
      %p188 = por %p186, %p187
      %p189 = scmp.ne.s32.totalorder %s181, %s184
      %p190 = scmp.eq.s32.totalorder %s19, 0
      %p191 = por %p189, %p190
      %p192 = scmp.ne.s32.totalorder %s181, %s184
      %p193 = scmp.eq.s32.totalorder %s24, 1
      %p194 = por %p192, %p193
      %p195 = scmp.ne.s32.totalorder %s184, %s185
      %p196 = scmp.eq.s32.totalorder %s24, 0
      %p197 = por %p195, %p196
      %p198 = scmp.ne.s32.totalorder %s184, %s185
      %p199 = scmp.eq.s32.totalorder %s25, 1
      %p200 = por %p198, %p199
      %p202 = scmp.ne.s32.totalorder %s185, %s201
      %p203 = scmp.eq.s32.totalorder %s25, 0
      %p204 = por %p202, %p203
      %s205 = ssub.s32 %s19, %s26
      %p206 = scmp.eq.s32.totalorder %s205, 0
      %s208 = sadd.s32 %s207, 1
      %s209 = scalar_select %p206, %s207, %s208
      %p212 = pneg %p206
      %p213 = scmp.eq.s32.totalorder %s19, 1
      %p214 = por %p212, %p213
      %p215 = scmp.ne.s32.totalorder %s207, %s210
      %p216 = scmp.eq.s32.totalorder %s19, 0
      %p217 = por %p215, %p216
      %p218 = scmp.ne.s32.totalorder %s207, %s210
      %p219 = scmp.eq.s32.totalorder %s24, 1
      %p220 = por %p218, %p219
      %p221 = scmp.ne.s32.totalorder %s210, %s211
      %p222 = scmp.eq.s32.totalorder %s24, 0
      %p223 = por %p221, %p222
      %p224 = scmp.ne.s32.totalorder %s210, %s211
      %p225 = scmp.eq.s32.totalorder %s25, 1
      %p226 = por %p224, %p225
      %p228 = scmp.ne.s32.totalorder %s211, %s227
      %p229 = scmp.eq.s32.totalorder %s25, 0
      %p230 = por %p228, %p229
      %p231 = scmp.le.s32.totalorder 1, %s19
      %p232 = scmp.lt.s32.totalorder %s19, 3
      %p233 = pnand %p231, %p232
      %p234 = pneg %p233
      // Predicated region
      $region9: #{tpu_custom_call.1} parent=5 // pred_check
        _
      $region10: #{tpu_custom_call.1} parent=5 // pred_check_branch
        %236 = sbr.rel (%p233) target = $region12
      $region11: #{tpu_custom_call.1} parent=5 // pred_region
        %s237 = ssub.s32 %s19, 1
        // Predicated region
        $region13: #{tpu_custom_call.1} parent=11 // pred_check
          %p238 = pneg %p66
        $region14: #{tpu_custom_call.1} parent=11 // pred_check_branch
          %240 = sbr.rel (%p238) target = $region16
        $region15: #{tpu_custom_call.1} parent=11 // pred_region
          %s242 = ssub.s32 4096, 4096
          %243 = vsyncadd [#allocation3], %s242
          %s244 = sshll.u32 [#allocation2], 4
          %s245 = int_to_ptr.vmem [resolvable:$true] %s244
          %250 = dma.hbm_to_vmem [thread:$0]  %s1, 4096, %s245, [#allocation3], 128, 128, 8
        $region16: #{tpu_custom_call.1} parent=11 // pred_fallthru
          _
        // Predicated region
        $region17: #{tpu_custom_call.1} parent=11 // pred_check
          %p251 = pneg %p87
        $region18: #{tpu_custom_call.1} parent=11 // pred_check_branch
          %253 = sbr.rel (%p251) target = $region20
        $region19: #{tpu_custom_call.1} parent=11 // pred_region
          _
        $region20: #{tpu_custom_call.1} parent=11 // pred_fallthru
          _
        // Predicated region
        $region21: #{tpu_custom_call.1} parent=11 // pred_check
          %p254 = pneg %p108
        $region22: #{tpu_custom_call.1} parent=11 // pred_check_branch
          %256 = sbr.rel (%p254) target = $region24
        $region23: #{tpu_custom_call.1} parent=11 // pred_region
          _
        $region24: #{tpu_custom_call.1} parent=11 // pred_fallthru
          _
        // Predicated region
        $region25: #{tpu_custom_call.1} parent=11 // pred_check
          %p257 = pneg %p129
        $region26: #{tpu_custom_call.1} parent=11 // pred_check_branch
          %259 = sbr.rel (%p257) target = $region28
        $region27: #{tpu_custom_call.1} parent=11 // pred_region
          _
        $region28: #{tpu_custom_call.1} parent=11 // pred_fallthru
          _
        // Predicated region
        $region29: #{tpu_custom_call.1} parent=11 // pred_check
          %p260 = pneg %p150
        $region30: #{tpu_custom_call.1} parent=11 // pred_check_branch
          %262 = sbr.rel (%p260) target = $region32
        $region31: #{tpu_custom_call.1} parent=11 // pred_region
          %s264 = ssub.s32 4096, 4096
          %265 = vsyncadd [#allocation6], %s264
          %s266 = sshll.u32 [#allocation5], 4
          %s267 = int_to_ptr.vmem [resolvable:$true] %s266
          %272 = dma.hbm_to_vmem [thread:$0]  %s5, 4096, %s267, [#allocation6], 128, 128, 8
        $region32: #{tpu_custom_call.1} parent=11 // pred_fallthru
          _
        // Predicated region
        $region33: #{tpu_custom_call.1} parent=11 // pred_check
          %p273 = pneg %p171
        $region34: #{tpu_custom_call.1} parent=11 // pred_check_branch
          %275 = sbr.rel (%p273) target = $region36
        $region35: #{tpu_custom_call.1} parent=11 // pred_region
          _
        $region36: #{tpu_custom_call.1} parent=11 // pred_fallthru
          _
      $region12: #{tpu_custom_call.1} parent=5 // pred_fallthru
        _
      %p276 = scmp.lt.s32.totalorder %s19, 2
      // Predicated region
      $region37: #{tpu_custom_call.1} parent=5 // pred_check
        %p277 = pneg %p276
      $region38: #{tpu_custom_call.1} parent=5 // pred_check_branch
        %279 = sbr.rel (%p277) target = $region40
      $region39: #{tpu_custom_call.1} parent=5 // pred_region
        // Predicated region
        $region41: #{tpu_custom_call.1} parent=39 // pred_check
          %p280 = pneg %p39
        $region42: #{tpu_custom_call.1} parent=39 // pred_check_branch
          %282 = sbr.rel (%p280) target = $region44
        $region43: #{tpu_custom_call.1} parent=39 // pred_region
          %p283 = scmp.lt.s32.totalorder %s19, 1
          %s284 = scalar_select %p283, %s19, 1
          %s285 = smul.addr %s284, 2
          %s286 = smul.addr %s285, 4
          %s287 = scalar_lea.vmem %s0, %s286
        $region44: #{tpu_custom_call.1} parent=39 // pred_fallthru
          _
        // Predicated region
        $region45: #{tpu_custom_call.1} parent=39 // pred_check
          %p288 = pneg %p191
        $region46: #{tpu_custom_call.1} parent=39 // pred_check_branch
          %290 = sbr.rel (%p288) target = $region48
        $region47: #{tpu_custom_call.1} parent=39 // pred_region
          %p291 = scmp.lt.s32.totalorder %s19, 1
          %s292 = scalar_select %p291, %s19, 1
          %s293 = smul.addr %s292, 8
          %s294 = scalar_lea.vmem %s7, %s293
        $region48: #{tpu_custom_call.1} parent=39 // pred_fallthru
          _
      $region40: #{tpu_custom_call.1} parent=5 // pred_fallthru
        _
      %p295 = scmp.le.s32.totalorder 1, %s19
      %p296 = scmp.lt.s32.totalorder %s19, 3
      %p297 = pnand %p295, %p296
      %p298 = pneg %p297
      // Predicated region
      $region49: #{tpu_custom_call.1} parent=5 // pred_check
        _
      $region50: #{tpu_custom_call.1} parent=5 // pred_check_branch
        %300 = sbr.rel (%p297) target = $region52
      $region51: #{tpu_custom_call.1} parent=5 // pred_region
        %s301 = ssub.s32 %s19, 1
        // Predicated region
        $region53: #{tpu_custom_call.1} parent=51 // pred_check
          %p302 = pneg %p66
        $region54: #{tpu_custom_call.1} parent=51 // pred_check_branch
          %304 = sbr.rel (%p302) target = $region56
        $region55: #{tpu_custom_call.1} parent=51 // pred_region
          %305 = dma.done [#allocation3], 4096
        $region56: #{tpu_custom_call.1} parent=51 // pred_fallthru
          _
        // Predicated region
        $region57: #{tpu_custom_call.1} parent=51 // pred_check
          %p306 = pneg %p150
        $region58: #{tpu_custom_call.1} parent=51 // pred_check_branch
          %308 = sbr.rel (%p306) target = $region60
        $region59: #{tpu_custom_call.1} parent=51 // pred_region
          %309 = dma.done [#allocation6], 4096
        $region60: #{tpu_custom_call.1} parent=51 // pred_fallthru
          _
        %p310 = scmp.lt.s32.totalorder %s24, 1
        %s311 = scalar_select %p310, %s24, 1
        %s312 = smul.addr %s311, 2
        %s313 = smul.addr %s312, 4
        %s314 = scalar_lea.vmem %s0, %s313
        %p315 = pneg %p45
        %p316 = pneg %p42
        %p317 = pneg %p66
        %p318 = pneg %p63
        %p319 = pneg %p87
        %p320 = pneg %p84
        %p321 = pneg %p108
        %p322 = pneg %p105
        %p323 = pneg %p129
        %p324 = pneg %p126
        %p325 = pneg %p150
        %p326 = pneg %p147
        %p327 = pneg %p171
        %p328 = pneg %p168
        %p329 = scmp.lt.s32.totalorder %s24, 1
        %s330 = scalar_select %p329, %s24, 1
        %s331 = smul.addr %s330, 8
        %s332 = scalar_lea.vmem %s7, %s331
        %p333 = pneg %p197
        %p334 = pneg %p194
        %p335 = pneg %p223
        %p336 = pneg %p220
        %s337 = sand.u32 %s210, 1
        %s338 = scalar_lea.sflag [#allocation4], %s337
        %s339 = sand.u32 %s210, 1
        %s340 = smul.addr %s339, 16
        %s341 = scalar_lea.vmem [#allocation7], %s340
        %p342 = scmp.lt.s32.totalorder %s24, 1
        %s343 = scalar_select %p342, %s24, 1
        %s344 = smul.addr %s343, 2
        %s345 = smul.addr %s344, 4
        %s346 = scalar_lea.vmem %s0, %s345
        %p347 = scmp.lt.s32.totalorder %s24, 1
        %s348 = scalar_select %p347, %s24, 1
        %s349 = smul.addr %s348, 8
        %s350 = scalar_lea.vmem %s7, %s349
        %v351 = vld [vmem:[%s346] sm:$0xff]
        %v352 = vld [vmem:[#allocation2] sm:$0xff]
        %v353 = vld [vmem:[#allocation2 + $0x8] sm:$0xff]
        %v354 = vld [vmem:[#allocation2 + $0x10] sm:$0xff]
        %v355 = vld [vmem:[#allocation2 + $0x18] sm:$0xff]
        %v356 = vld [vmem:[#allocation2 + $0x20] sm:$0xff]
        %v357 = vld [vmem:[#allocation2 + $0x28] sm:$0xff]
        %v358 = vld [vmem:[#allocation2 + $0x30] sm:$0xff]
        %v359 = vld [vmem:[#allocation2 + $0x38] sm:$0xff]
        %v360 = vld [vmem:[#allocation2 + $0x40] sm:$0xff]
        %v361 = vld [vmem:[#allocation2 + $0x48] sm:$0xff]
        %v362 = vld [vmem:[#allocation2 + $0x50] sm:$0xff]
        %v363 = vld [vmem:[#allocation2 + $0x58] sm:$0xff]
        %v364 = vld [vmem:[#allocation2 + $0x60] sm:$0xff]
        %v365 = vld [vmem:[#allocation2 + $0x68] sm:$0xff]
        %v366 = vld [vmem:[#allocation2 + $0x70] sm:$0xff]
        %v367 = vld [vmem:[#allocation2 + $0x78] sm:$0xff]
        %v368 = vld [vmem:[#allocation2 + $0x80] sm:$0xff]
        %v369 = vld [vmem:[#allocation2 + $0x88] sm:$0xff]
        %v370 = vld [vmem:[#allocation2 + $0x90] sm:$0xff]
        %v371 = vld [vmem:[#allocation2 + $0x98] sm:$0xff]
        %v372 = vld [vmem:[#allocation2 + $0xa0] sm:$0xff]
        %v373 = vld [vmem:[#allocation2 + $0xa8] sm:$0xff]
        %v374 = vld [vmem:[#allocation2 + $0xb0] sm:$0xff]
        %v375 = vld [vmem:[#allocation2 + $0xb8] sm:$0xff]
        %v376 = vld [vmem:[#allocation2 + $0xc0] sm:$0xff]
        %v377 = vld [vmem:[#allocation2 + $0xc8] sm:$0xff]
        %v378 = vld [vmem:[#allocation2 + $0xd0] sm:$0xff]
        %v379 = vld [vmem:[#allocation2 + $0xd8] sm:$0xff]
        %v380 = vld [vmem:[#allocation2 + $0xe0] sm:$0xff]
        %v381 = vld [vmem:[#allocation2 + $0xe8] sm:$0xff]
        %v382 = vld [vmem:[#allocation2 + $0xf0] sm:$0xff]
        %v383 = vld [vmem:[#allocation2 + $0xf8] sm:$0xff]
        %v384 = vld [vmem:[%s2] sm:$0x3]
        %v386 = vlaneseq
        %v387 = vshrl.u32 %v386, 7
        %v388 = vsub.s32 0, %v387
        %v389 = vrot.slane %v384, %v388
        %v390 = vlaneseq
        %v391 = vshrl.u32 %v390, 7
        %v392 = vsub.s32 1, %v391
        %v393 = vrot.slane %v384, %v392
        %v397 = vunpack.c.l.b16 %v351
        %v398 = vunpack.c.h.b16 %v351
        %v399 = vpack.c.b16 %v397, %v397
        %v400 = vpack.c.b16 %v398, %v398
        %v435 = vunpack.c.l.b16 %v352
        %v436 = vunpack.c.h.b16 %v352
        %v437 = vunpack.c.l.b16 %v353
        %v438 = vunpack.c.h.b16 %v353
        %v439 = vunpack.c.l.b16 %v354
        %v440 = vunpack.c.h.b16 %v354
        %v441 = vunpack.c.l.b16 %v355
        %v442 = vunpack.c.h.b16 %v355
        %v443 = vunpack.c.l.b16 %v356
        %v444 = vunpack.c.h.b16 %v356
        %v445 = vunpack.c.l.b16 %v357
        %v446 = vunpack.c.h.b16 %v357
        %v447 = vunpack.c.l.b16 %v358
        %v448 = vunpack.c.h.b16 %v358
        %v449 = vunpack.c.l.b16 %v359
        %v450 = vunpack.c.h.b16 %v359
        %v451 = vunpack.c.l.b16 %v360
        %v452 = vunpack.c.h.b16 %v360
        %v453 = vunpack.c.l.b16 %v361
        %v454 = vunpack.c.h.b16 %v361
        %v455 = vunpack.c.l.b16 %v362
        %v456 = vunpack.c.h.b16 %v362
        %v457 = vunpack.c.l.b16 %v363
        %v458 = vunpack.c.h.b16 %v363
        %v459 = vunpack.c.l.b16 %v364
        %v460 = vunpack.c.h.b16 %v364
        %v461 = vunpack.c.l.b16 %v365
        %v462 = vunpack.c.h.b16 %v365
        %v463 = vunpack.c.l.b16 %v366
        %v464 = vunpack.c.h.b16 %v366
        %v465 = vunpack.c.l.b16 %v367
        %v466 = vunpack.c.h.b16 %v367
        %v467 = vunpack.c.l.b16 %v368
        %v468 = vunpack.c.h.b16 %v368
        %v469 = vunpack.c.l.b16 %v369
        %v470 = vunpack.c.h.b16 %v369
        %v471 = vunpack.c.l.b16 %v370
        %v472 = vunpack.c.h.b16 %v370
        %v473 = vunpack.c.l.b16 %v371
        %v474 = vunpack.c.h.b16 %v371
        %v475 = vunpack.c.l.b16 %v372
        %v476 = vunpack.c.h.b16 %v372
        %v477 = vunpack.c.l.b16 %v373
        %v478 = vunpack.c.h.b16 %v373
        %v479 = vunpack.c.l.b16 %v374
        %v480 = vunpack.c.h.b16 %v374
        %v481 = vunpack.c.l.b16 %v375
        %v482 = vunpack.c.h.b16 %v375
        %v483 = vunpack.c.l.b16 %v376
        %v484 = vunpack.c.h.b16 %v376
        %v485 = vunpack.c.l.b16 %v377
        %v486 = vunpack.c.h.b16 %v377
        %v487 = vunpack.c.l.b16 %v378
        %v488 = vunpack.c.h.b16 %v378
        %v489 = vunpack.c.l.b16 %v379
        %v490 = vunpack.c.h.b16 %v379
        %v491 = vunpack.c.l.b16 %v380
        %v492 = vunpack.c.h.b16 %v380
        %v493 = vunpack.c.l.b16 %v381
        %v494 = vunpack.c.h.b16 %v381
        %v495 = vunpack.c.l.b16 %v382
        %v496 = vunpack.c.h.b16 %v382
        %v497 = vunpack.c.l.b16 %v383
        %v498 = vunpack.c.h.b16 %v383
        %v499 = vpack.c.b16 %v437, %v435
        %v500 = vpack.c.b16 %v438, %v436
        %v501 = vpack.c.b16 %v441, %v439
        %v502 = vpack.c.b16 %v442, %v440
        %v503 = vpack.c.b16 %v445, %v443
        %v504 = vpack.c.b16 %v446, %v444
        %v505 = vpack.c.b16 %v449, %v447
        %v506 = vpack.c.b16 %v450, %v448
        %v507 = vpack.c.b16 %v453, %v451
        %v508 = vpack.c.b16 %v454, %v452
        %v509 = vpack.c.b16 %v457, %v455
        %v510 = vpack.c.b16 %v458, %v456
        %v511 = vpack.c.b16 %v461, %v459
        %v512 = vpack.c.b16 %v462, %v460
        %v513 = vpack.c.b16 %v465, %v463
        %v514 = vpack.c.b16 %v466, %v464
        %v515 = vpack.c.b16 %v469, %v467
        %v516 = vpack.c.b16 %v470, %v468
        %v517 = vpack.c.b16 %v473, %v471
        %v518 = vpack.c.b16 %v474, %v472
        %v519 = vpack.c.b16 %v477, %v475
        %v520 = vpack.c.b16 %v478, %v476
        %v521 = vpack.c.b16 %v481, %v479
        %v522 = vpack.c.b16 %v482, %v480
        %v523 = vpack.c.b16 %v485, %v483
        %v524 = vpack.c.b16 %v486, %v484
        %v525 = vpack.c.b16 %v489, %v487
        %v526 = vpack.c.b16 %v490, %v488
        %v527 = vpack.c.b16 %v493, %v491
        %v528 = vpack.c.b16 %v494, %v492
        %v529 = vpack.c.b16 %v497, %v495
        %v530 = vpack.c.b16 %v498, %v496
        %563 = vmatprep.subr.bf16.mxu0 %v500
        %564 = vmatpush1.bf16.msra.mxu0 %v499
        %565 = vmatprep.subr.bf16.mxu0 %v502
        %566 = vmatpush1.bf16.msra.mxu0 %v501
        %567 = vmatprep.subr.bf16.mxu0 %v504
        %568 = vmatpush1.bf16.msra.mxu0 %v503
        %569 = vmatprep.subr.bf16.mxu0 %v506
        %570 = vmatpush1.bf16.msra.mxu0 %v505
        %571 = vmatprep.subr.bf16.mxu0 %v508
        %572 = vmatpush1.bf16.msra.mxu0 %v507
        %573 = vmatprep.subr.bf16.mxu0 %v510
        %574 = vmatpush1.bf16.msra.mxu0 %v509
        %575 = vmatprep.subr.bf16.mxu0 %v512
        %576 = vmatpush1.bf16.msra.mxu0 %v511
        %577 = vmatprep.subr.bf16.mxu0 %v514
        %578 = vmatpush1.bf16.msra.mxu0 %v513
        %579 = vmatprep.subr.bf16.mxu0 %v516
        %580 = vmatpush1.bf16.msra.mxu0 %v515
        %581 = vmatprep.subr.bf16.mxu0 %v518
        %582 = vmatpush1.bf16.msra.mxu0 %v517
        %583 = vmatprep.subr.bf16.mxu0 %v520
        %584 = vmatpush1.bf16.msra.mxu0 %v519
        %585 = vmatprep.subr.bf16.mxu0 %v522
        %586 = vmatpush1.bf16.msra.mxu0 %v521
        %587 = vmatprep.subr.bf16.mxu0 %v524
        %588 = vmatpush1.bf16.msra.mxu0 %v523
        %589 = vmatprep.subr.bf16.mxu0 %v526
        %590 = vmatpush1.bf16.msra.mxu0 %v525
        %591 = vmatprep.subr.bf16.mxu0 %v528
        %592 = vmatpush1.bf16.msra.mxu0 %v527
        %593 = vmatprep.subr.bf16.mxu0 %v530
        %594 = vmatpush1.bf16.msra.mxu0 %v529
        %595 = vmatprep.mubr.bf16.mxu0 %v400
        %596 = vmatmul.mubr.bf16.gmra.mrb[0].mxu0 %v399
        %v597 = vpop.f32.mrb[0].mxu0
        %v598 = vadd.f32 %v389, %v597
        %v599 = vpop.f32.mrb[0].mxu0
        %v600 = vadd.f32 %v393, %v599
        %v601 = vpop.f32.mrb[0].mxu0
        %v602 = vpop.f32.mrb[0].mxu0
        %603 = vdwg.mxu0
        %vm604 = vcmp.ge.f32.partialorder %v598, 0.0
        %vm605 = vcmp.ge.f32.partialorder %v600, 0.0
        %v606 = vmul.f32 %v598, 0.01
        %v607 = vmul.f32 %v600, 0.01
        %v608 = vsel %vm604, %v598, %v606
        %v609 = vsel %vm605, %v600, %v607
        %v610 = vadd.f32 %v608, %v609
        %611 = vadd.xlane.f32.xlu0 %v610
        %v612 = vpop.xlane.xlu0 %611
        %v613 = vmul.f32 %v608, %v608
        %v614 = vmul.f32 %v609, %v609
        %v615 = vadd.f32 %v613, %v614
        %616 = vadd.xlane.f32.xlu0 %v615
        %v617 = vpop.xlane.xlu0 %616
        %v618 = vmul.f32 %v612, 0.03125
        %v619 = vmul.f32 %v617, 0.03125
        %v620 = vmul.f32 %v618, %v618
        %v621 = vsub.f32 %v619, %v620
        %v622 = vmax.f32 %v621, 0.0
        %v623 = vsub.f32 %v608, %v618
        %v624 = vsub.f32 %v609, %v618
        %v625 = vadd.f32 %v622, 1e-05
        %v626 = vrsqrt.pop %v625
        %v627 = vmul.f32 %v623, %v626
        %v628 = vmul.f32 %v624, %v626
        %v629 = vld [vmem:[%s3] sm:$0x3]
        %v631 = vlaneseq
        %v632 = vshrl.u32 %v631, 7
        %v633 = vsub.s32 0, %v632
        %v634 = vrot.slane %v629, %v633
        %v635 = vlaneseq
        %v636 = vshrl.u32 %v635, 7
        %v637 = vsub.s32 1, %v636
        %v638 = vrot.slane %v629, %v637
        %v641 = vmul.f32 %v627, %v634
        %v642 = vmul.f32 %v628, %v638
        %v643 = vld [vmem:[%s4] sm:$0x3]
        %v645 = vlaneseq
        %v646 = vshrl.u32 %v645, 7
        %v647 = vsub.s32 0, %v646
        %v648 = vrot.slane %v643, %v647
        %v649 = vlaneseq
        %v650 = vshrl.u32 %v649, 7
        %v651 = vsub.s32 1, %v650
        %v652 = vrot.slane %v643, %v651
        %v655 = vadd.f32 %v641, %v648
        %v656 = vadd.f32 %v642, %v652
        %v657 = vpack.c.bf16 %v655, %v655
        %v658 = vpack.c.bf16 %v656, %v656
        %v659 = vld [vmem:[#allocation5] sm:$0xff]
        %v660 = vld [vmem:[#allocation5 + $0x8] sm:$0xff]
        %v661 = vld [vmem:[#allocation5 + $0x10] sm:$0xff]
        %v662 = vld [vmem:[#allocation5 + $0x18] sm:$0xff]
        %v663 = vld [vmem:[#allocation5 + $0x20] sm:$0xff]
        %v664 = vld [vmem:[#allocation5 + $0x28] sm:$0xff]
        %v665 = vld [vmem:[#allocation5 + $0x30] sm:$0xff]
        %v666 = vld [vmem:[#allocation5 + $0x38] sm:$0xff]
        %v667 = vld [vmem:[#allocation5 + $0x40] sm:$0xff]
        %v668 = vld [vmem:[#allocation5 + $0x48] sm:$0xff]
        %v669 = vld [vmem:[#allocation5 + $0x50] sm:$0xff]
        %v670 = vld [vmem:[#allocation5 + $0x58] sm:$0xff]
        %v671 = vld [vmem:[#allocation5 + $0x60] sm:$0xff]
        %v672 = vld [vmem:[#allocation5 + $0x68] sm:$0xff]
        %v673 = vld [vmem:[#allocation5 + $0x70] sm:$0xff]
        %v674 = vld [vmem:[#allocation5 + $0x78] sm:$0xff]
        %v675 = vld [vmem:[#allocation5 + $0x80] sm:$0xff]
        %v676 = vld [vmem:[#allocation5 + $0x88] sm:$0xff]
        %v677 = vld [vmem:[#allocation5 + $0x90] sm:$0xff]
        %v678 = vld [vmem:[#allocation5 + $0x98] sm:$0xff]
        %v679 = vld [vmem:[#allocation5 + $0xa0] sm:$0xff]
        %v680 = vld [vmem:[#allocation5 + $0xa8] sm:$0xff]
        %v681 = vld [vmem:[#allocation5 + $0xb0] sm:$0xff]
        %v682 = vld [vmem:[#allocation5 + $0xb8] sm:$0xff]
        %v683 = vld [vmem:[#allocation5 + $0xc0] sm:$0xff]
        %v684 = vld [vmem:[#allocation5 + $0xc8] sm:$0xff]
        %v685 = vld [vmem:[#allocation5 + $0xd0] sm:$0xff]
        %v686 = vld [vmem:[#allocation5 + $0xd8] sm:$0xff]
        %v687 = vld [vmem:[#allocation5 + $0xe0] sm:$0xff]
        %v688 = vld [vmem:[#allocation5 + $0xe8] sm:$0xff]
        %v689 = vld [vmem:[#allocation5 + $0xf0] sm:$0xff]
        %v690 = vld [vmem:[#allocation5 + $0xf8] sm:$0xff]
        %v691 = vld [vmem:[%s6] sm:$0x3]
        %v693 = vlaneseq
        %v694 = vshrl.u32 %v693, 7
        %v695 = vsub.s32 0, %v694
        %v696 = vrot.slane %v691, %v695
        %v697 = vlaneseq
        %v698 = vshrl.u32 %v697, 7
        %v699 = vsub.s32 1, %v698
        %v700 = vrot.slane %v691, %v699
        %v735 = vunpack.c.l.b16 %v659
        %v736 = vunpack.c.h.b16 %v659
        %v737 = vunpack.c.l.b16 %v660
        %v738 = vunpack.c.h.b16 %v660
        %v739 = vunpack.c.l.b16 %v661
        %v740 = vunpack.c.h.b16 %v661
        %v741 = vunpack.c.l.b16 %v662
        %v742 = vunpack.c.h.b16 %v662
        %v743 = vunpack.c.l.b16 %v663
        %v744 = vunpack.c.h.b16 %v663
        %v745 = vunpack.c.l.b16 %v664
        %v746 = vunpack.c.h.b16 %v664
        %v747 = vunpack.c.l.b16 %v665
        %v748 = vunpack.c.h.b16 %v665
        %v749 = vunpack.c.l.b16 %v666
        %v750 = vunpack.c.h.b16 %v666
        %v751 = vunpack.c.l.b16 %v667
        %v752 = vunpack.c.h.b16 %v667
        %v753 = vunpack.c.l.b16 %v668
        %v754 = vunpack.c.h.b16 %v668
        %v755 = vunpack.c.l.b16 %v669
        %v756 = vunpack.c.h.b16 %v669
        %v757 = vunpack.c.l.b16 %v670
        %v758 = vunpack.c.h.b16 %v670
        %v759 = vunpack.c.l.b16 %v671
        %v760 = vunpack.c.h.b16 %v671
        %v761 = vunpack.c.l.b16 %v672
        %v762 = vunpack.c.h.b16 %v672
        %v763 = vunpack.c.l.b16 %v673
        %v764 = vunpack.c.h.b16 %v673
        %v765 = vunpack.c.l.b16 %v674
        %v766 = vunpack.c.h.b16 %v674
        %v767 = vunpack.c.l.b16 %v675
        %v768 = vunpack.c.h.b16 %v675
        %v769 = vunpack.c.l.b16 %v676
        %v770 = vunpack.c.h.b16 %v676
        %v771 = vunpack.c.l.b16 %v677
        %v772 = vunpack.c.h.b16 %v677
        %v773 = vunpack.c.l.b16 %v678
        %v774 = vunpack.c.h.b16 %v678
        %v775 = vunpack.c.l.b16 %v679
        %v776 = vunpack.c.h.b16 %v679
        %v777 = vunpack.c.l.b16 %v680
        %v778 = vunpack.c.h.b16 %v680
        %v779 = vunpack.c.l.b16 %v681
        %v780 = vunpack.c.h.b16 %v681
        %v781 = vunpack.c.l.b16 %v682
        %v782 = vunpack.c.h.b16 %v682
        %v783 = vunpack.c.l.b16 %v683
        %v784 = vunpack.c.h.b16 %v683
        %v785 = vunpack.c.l.b16 %v684
        %v786 = vunpack.c.h.b16 %v684
        %v787 = vunpack.c.l.b16 %v685
        %v788 = vunpack.c.h.b16 %v685
        %v789 = vunpack.c.l.b16 %v686
        %v790 = vunpack.c.h.b16 %v686
        %v791 = vunpack.c.l.b16 %v687
        %v792 = vunpack.c.h.b16 %v687
        %v793 = vunpack.c.l.b16 %v688
        %v794 = vunpack.c.h.b16 %v688
        %v795 = vunpack.c.l.b16 %v689
        %v796 = vunpack.c.h.b16 %v689
        %v797 = vunpack.c.l.b16 %v690
        %v798 = vunpack.c.h.b16 %v690
        %v799 = vpack.c.b16 %v737, %v735
        %v800 = vpack.c.b16 %v738, %v736
        %v801 = vpack.c.b16 %v741, %v739
        %v802 = vpack.c.b16 %v742, %v740
        %v803 = vpack.c.b16 %v745, %v743
        %v804 = vpack.c.b16 %v746, %v744
        %v805 = vpack.c.b16 %v749, %v747
        %v806 = vpack.c.b16 %v750, %v748
        %v807 = vpack.c.b16 %v753, %v751
        %v808 = vpack.c.b16 %v754, %v752
        %v809 = vpack.c.b16 %v757, %v755
        %v810 = vpack.c.b16 %v758, %v756
        %v811 = vpack.c.b16 %v761, %v759
        %v812 = vpack.c.b16 %v762, %v760
        %v813 = vpack.c.b16 %v765, %v763
        %v814 = vpack.c.b16 %v766, %v764
        %v815 = vpack.c.b16 %v769, %v767
        %v816 = vpack.c.b16 %v770, %v768
        %v817 = vpack.c.b16 %v773, %v771
        %v818 = vpack.c.b16 %v774, %v772
        %v819 = vpack.c.b16 %v777, %v775
        %v820 = vpack.c.b16 %v778, %v776
        %v821 = vpack.c.b16 %v781, %v779
        %v822 = vpack.c.b16 %v782, %v780
        %v823 = vpack.c.b16 %v785, %v783
        %v824 = vpack.c.b16 %v786, %v784
        %v825 = vpack.c.b16 %v789, %v787
        %v826 = vpack.c.b16 %v790, %v788
        %v827 = vpack.c.b16 %v793, %v791
        %v828 = vpack.c.b16 %v794, %v792
        %v829 = vpack.c.b16 %v797, %v795
        %v830 = vpack.c.b16 %v798, %v796
        %863 = vmatprep.subr.bf16.mxu0 %v800
        %864 = vmatpush1.bf16.msra.mxu0 %v799
        %865 = vmatprep.subr.bf16.mxu0 %v802
        %866 = vmatpush1.bf16.msra.mxu0 %v801
        %867 = vmatprep.subr.bf16.mxu0 %v804
        %868 = vmatpush1.bf16.msra.mxu0 %v803
        %869 = vmatprep.subr.bf16.mxu0 %v806
        %870 = vmatpush1.bf16.msra.mxu0 %v805
        %871 = vmatprep.subr.bf16.mxu0 %v808
        %872 = vmatpush1.bf16.msra.mxu0 %v807
        %873 = vmatprep.subr.bf16.mxu0 %v810
        %874 = vmatpush1.bf16.msra.mxu0 %v809
        %875 = vmatprep.subr.bf16.mxu0 %v812
        %876 = vmatpush1.bf16.msra.mxu0 %v811
        %877 = vmatprep.subr.bf16.mxu0 %v814
        %878 = vmatpush1.bf16.msra.mxu0 %v813
        %879 = vmatprep.subr.bf16.mxu0 %v816
        %880 = vmatpush1.bf16.msra.mxu0 %v815
        %881 = vmatprep.subr.bf16.mxu0 %v818
        %882 = vmatpush1.bf16.msra.mxu0 %v817
        %883 = vmatprep.subr.bf16.mxu0 %v820
        %884 = vmatpush1.bf16.msra.mxu0 %v819
        %885 = vmatprep.subr.bf16.mxu0 %v822
        %886 = vmatpush1.bf16.msra.mxu0 %v821
        %887 = vmatprep.subr.bf16.mxu0 %v824
        %888 = vmatpush1.bf16.msra.mxu0 %v823
        %889 = vmatprep.subr.bf16.mxu0 %v826
        %890 = vmatpush1.bf16.msra.mxu0 %v825
        %891 = vmatprep.subr.bf16.mxu0 %v828
        %892 = vmatpush1.bf16.msra.mxu0 %v827
        %893 = vmatprep.subr.bf16.mxu0 %v830
        %894 = vmatpush1.bf16.msra.mxu0 %v829
        %895 = vmatprep.mubr.bf16.mxu0 %v658
        %896 = vmatmul.mubr.bf16.gmra.mrb[0].mxu0 %v657
        %v897 = vpop.f32.mrb[0].mxu0
        %v898 = vadd.f32 %v696, %v897
        %v899 = vpop.f32.mrb[0].mxu0
        %v900 = vadd.f32 %v700, %v899
        %v901 = vpop.f32.mrb[0].mxu0
        %v902 = vpop.f32.mrb[0].mxu0
        %903 = vdwg.mxu0
        %v904 = vld [vmem:[%s350] sm:$0xff]
        %906 = vset.pattern.permute.xlu0 0
        %907 = vperm.xlu0 %906, %v904
        %v908 = vpop.permute.xlu0 %907
        %v910 = vmul.f32 %v898, %v908
        %v911 = vmul.f32 %v900, %v908
        %912 = vst [vmem:[%s341] sm:$0xff] %v910
        %913 = vst [vmem:[%s341 + $0x8] sm:$0xff] %v911
        %s914 = sand.u32 %s210, 1
        %s915 = scalar_lea.sflag [#allocation4], %s914
        %s916 = sand.u32 %s210, 1
        %s917 = smul.addr %s916, 16
        %s918 = scalar_lea.vmem [#allocation7], %s917
        // Predicated region
        $region61: #{tpu_custom_call.1} parent=51 // pred_check
          %p919 = pneg %p220
        $region62: #{tpu_custom_call.1} parent=51 // pred_check_branch
          %921 = sbr.rel (%p919) target = $region64
        $region63: #{tpu_custom_call.1} parent=51 // pred_region
          %s923 = ssub.s32 256, 256
          %924 = vsyncadd %s915, %s923
          %s925 = smul.addr %s24, 2
          %s926 = smul.addr %s925, 128
          %s927 = scalar_lea.hbm %s8, %s926
          %s929 = sshll.u32 %s918, 4
          %s930 = int_to_ptr.vmem [resolvable:$true] %s929
          %932 = dma.vmem_to_hbm [thread:$0]  %s930, 256, %s927, %s915
        $region64: #{tpu_custom_call.1} parent=51 // pred_fallthru
          _
      $region52: #{tpu_custom_call.1} parent=5 // pred_fallthru
        _
      %p933 = scmp.le.s32.totalorder 2, %s19
      // Predicated region
      $region65: #{tpu_custom_call.1} parent=5 // pred_check
        %p934 = pneg %p933
      $region66: #{tpu_custom_call.1} parent=5 // pred_check_branch
        %936 = sbr.rel (%p934) target = $region68
      $region67: #{tpu_custom_call.1} parent=5 // pred_region
        %s937 = ssub.s32 %s19, 2
        // Predicated region
        $region69: #{tpu_custom_call.1} parent=67 // pred_check
          %p938 = pneg %p226
        $region70: #{tpu_custom_call.1} parent=67 // pred_check_branch
          %940 = sbr.rel (%p938) target = $region72
        $region71: #{tpu_custom_call.1} parent=67 // pred_region
          %s941 = sand.u32 %s211, 1
          %s942 = scalar_lea.sflag [#allocation4], %s941
          %s943 = sand.u32 %s211, 1
          %s944 = smul.addr %s943, 16
          %s945 = scalar_lea.vmem [#allocation7], %s944
          %946 = dma.done %s942, 256
        $region72: #{tpu_custom_call.1} parent=67 // pred_fallthru
          _
      $region68: #{tpu_custom_call.1} parent=5 // pred_fallthru
        _
    $region6: #{tpu_custom_call.1} parent=1 // loop_footer
      %s23 = sadd.s32 1, %s19
    $region7: #{tpu_custom_call.1} parent=1 // loop_footer_branch
      %18 = sbr.rel target = $region3
    $region8: #{tpu_custom_call.1} parent=1 // loop_exit
      _
    %947 = vsyncpa [#allocation3], 1
    %s948 = scalar_lea.sflag [#allocation3], 1
    %949 = vsyncpa %s948, 1
    %950 = vsyncpa [#allocation6], 1
    %951 = vsyncpa [#allocation4], 1
    %s952 = scalar_lea.sflag [#allocation4], 1
    %953 = vsyncpa %s952, 1

</llo_original>
